<compile_context>
chip_gen: v5e
topology: v5e:2x2
jax: 0.10.0
libtpu: 0.0.40
codegen_flags: <defaults>
</compile_context>

<pallas_src>
import functools

import jax
import jax.numpy as jnp
from jax.experimental import pallas as pl
from jax.experimental.pallas import tpu as pltpu


def _fused_kernel(x_ref, w_ref, gamma_ref, beta_ref, o_ref, patch_ref, *,
                  N, Cin, Cout, k, W, OH, OW, MF, MFp, kkCin, eps):
    """Fused Conv2d(valid) + Mish + BatchNorm2d (batch stats) for the whole (small) batch.

    x_ref     : (N, Cin, HWp)      flattened, zero-padded image planes
    w_ref     : (Cout, kkCin_pad)  weights ordered (ki, kj, ci); column kkCin holds the conv bias
    gamma_ref : (Cout, 1)          BN weight
    beta_ref  : (Cout, 1)          BN bias
    o_ref     : (N, Cout, MFp)     output; lanes ow >= OW / >= MF are garbage (masked & sliced off)
    patch_ref : (kkCin_pad, MFp)   VMEM scratch for the im2col patch matrix
    """
    # Validity mask over the MFp flattened lanes: column m is a real output iff m < MF and ow < OW.
    cols = jax.lax.broadcasted_iota(jnp.int32, (1, MFp), 1)
    mask = jnp.logical_and(cols % W < OW, cols < MF).astype(jnp.float32)

    # Init patch matrix: zero tail rows, set the bias row (row kkCin) to ones (bias folded into dot).
    patch_ref[...] = jnp.zeros_like(patch_ref)
    patch_ref[kkCin:kkCin + 1, :] = jnp.ones((1, MFp), jnp.float32)

    w = w_ref[...]                                     # (Cout, kkCin_pad), bias in column kkCin
    s = jnp.zeros((Cout, 1), jnp.float32)
    ss = jnp.zeros((Cout, 1), jnp.float32)

    for n in range(N):                                 # static unrolled loop (N is tiny)
        xb = x_ref[n]                                  # (Cin, HWp)
        # Assemble im2col patches: 9 sublane-contiguous stores of statically shifted slices.
        for ki in range(k):
            for kj in range(k):
                off = ki * W + kj
                row = (ki * k + kj) * Cin
                patch_ref[row:row + Cin, :] = xb[:, off:off + MFp]
        # Conv + bias in one MXU matmul: (Cout, kkCin_pad) x (kkCin_pad, MFp).
        y = jnp.dot(w, patch_ref[...], preferred_element_type=jnp.float32)
        # Mish: x * tanh(softplus(x)) = x * u / (u + 2) with u = e^x (e^x + 2); clamp large x.
        t = jnp.exp(jnp.minimum(y, 20.0))
        u = t * (t + 2.0)
        a = jnp.where(y > 20.0, y, y * (u / (u + 2.0)))
        o_ref[n] = a                                   # stash unnormalized activations in VMEM
        am = a * mask                                  # exclude garbage lanes from the statistics
        s = s + jnp.sum(am, axis=1, keepdims=True)
        ss = ss + jnp.sum(am * a, axis=1, keepdims=True)

    # Global (batch) statistics and folded BN affine, all in-kernel.
    cnt = jnp.float32(N * OH * OW)
    mean = s / cnt                                     # (Cout, 1)
    var = ss / cnt - mean * mean                       # biased variance (PyTorch training-mode norm)
    scale = gamma_ref[...] * jax.lax.rsqrt(var + eps)  # (Cout, 1)
    shift = beta_ref[...] - mean * scale               # (Cout, 1)

    for n in range(N):                                 # normalize in place (still VMEM-resident)
        o_ref[n] = o_ref[n] * scale + shift


def model_new_forward(x, conv_w, conv_b, bn_gamma, bn_beta, *, eps=1e-5):
    """x: (N, Cin, H, W) f32 -> (N, Cout, OH, OW) f32  (Conv2d -> Mish -> BatchNorm2d batch stats)."""
    N, Cin, H, W = x.shape
    Cout, _, k, _ = conv_w.shape
    OH, OW = H - k + 1, W - k + 1
    MF = OH * W                                 # flat output positions per image (cols ow>=OW garbage)
    MFp = ((MF + 127) // 128) * 128             # pad lanes to a multiple of 128 (lane-dense stores)
    max_off = (k - 1) * (W + 1)                 # largest static shift used by the patch assembly
    HWp = max_off + MFp                         # padded flat input length so all slices stay in-bounds
    kkCin = k * k * Cin
    kkCin_pad = ((kkCin + 1 + 7) // 8) * 8      # + 1 bias row, rounded up to a sublane multiple

    xf = jnp.pad(x.reshape(N, Cin, H * W).astype(jnp.float32),
                 ((0, 0), (0, 0), (0, HWp - H * W)))

    # Weights ordered (ki, kj, ci) so each shift fills Cin contiguous patch rows; fold bias as a column.
    w2 = conv_w.transpose(0, 2, 3, 1).reshape(Cout, kkCin).astype(jnp.float32)
    w2 = jnp.concatenate(
        [w2, conv_b.reshape(Cout, 1).astype(jnp.float32),
         jnp.zeros((Cout, kkCin_pad - kkCin - 1), jnp.float32)], axis=1)
    gamma = bn_gamma.reshape(Cout, 1).astype(jnp.float32)
    beta = bn_beta.reshape(Cout, 1).astype(jnp.float32)

    kernel = functools.partial(
        _fused_kernel, N=N, Cin=Cin, Cout=Cout, k=k, W=W, OH=OH, OW=OW,
        MF=MF, MFp=MFp, kkCin=kkCin, eps=eps)

    # TODO(synk): PyTorch BatchNorm2d also updates running_mean/running_var (module state);
    # only the forward output is produced here.
    y = pl.pallas_call(
        kernel,
        grid=(1,),
        in_specs=[pl.BlockSpec((N, Cin, HWp), lambda i: (0, 0, 0)),
                  pl.BlockSpec((Cout, kkCin_pad), lambda i: (0, 0)),
                  pl.BlockSpec((Cout, 1), lambda i: (0, 0)),
                  pl.BlockSpec((Cout, 1), lambda i: (0, 0))],
        out_specs=pl.BlockSpec((N, Cout, MFp), lambda i: (0, 0, 0)),
        out_shape=jax.ShapeDtypeStruct((N, Cout, MFp), jnp.float32),
        scratch_shapes=[pltpu.VMEM((kkCin_pad, MFp), jnp.float32)],
        compiler_params=pltpu.CompilerParams(dimension_semantics=("arbitrary",)),
    )(xf, w2, gamma, beta)

    # (N, Cout, MFp) -> keep the MF real columns -> (N, Cout, OH, W) -> drop the k-1 garbage columns.
    return y[:, :, :MF].reshape(N, Cout, OH, W)[:, :, :, :OW]


if __name__ == "__main__":
    # Small shapes consistent with the module: batch=2, in_channels=3, out_channels=16,
    # spatial=16, kernel_size=3.
    N, Cin, Cout, H, W, k = 2, 3, 16, 16, 16, 3

    key = jax.random.PRNGKey(0)
    kx, kw, kb = jax.random.split(key, 3)
    x = jax.random.normal(kx, (N, Cin, H, W), dtype=jnp.float32)

    # Deterministic parameter init (PyTorch-like scale for conv).
    fan_in = Cin * k * k
    bound = 1.0 / (fan_in ** 0.5)
    conv_w = jax.random.uniform(kw, (Cout, Cin, k, k), jnp.float32, -bound, bound)
    conv_b = jax.random.uniform(kb, (Cout,), jnp.float32, -bound, bound)
    bn_gamma = jnp.ones((Cout,), jnp.float32)   # BatchNorm2d default weight
    bn_beta = jnp.zeros((Cout,), jnp.float32)   # BatchNorm2d default bias

    out = jax.jit(model_new_forward)(x, conv_w, conv_b, bn_gamma, bn_beta)
    jax.block_until_ready(out)

    # Sanity check against a plain-JAX reference.
    y_ref = jax.lax.conv_general_dilated(
        x, conv_w, window_strides=(1, 1), padding="VALID",
        dimension_numbers=("NCHW", "OIHW", "NCHW"))
    y_ref = y_ref + conv_b[None, :, None, None]
    y_ref = y_ref * jnp.tanh(jnp.log1p(jnp.exp(y_ref)))
    mean = jnp.mean(y_ref, axis=(0, 2, 3), keepdims=True)
    var = jnp.mean((y_ref - mean) ** 2, axis=(0, 2, 3), keepdims=True)
    y_ref = (y_ref - mean) * jax.lax.rsqrt(var + 1e-5)
    y_ref = y_ref * bn_gamma[None, :, None, None] + bn_beta[None, :, None, None]

    assert out.shape == y_ref.shape == (N, Cout, H - k + 1, W - k + 1)
    assert jnp.max(jnp.abs(out - y_ref)) < 1e-3

    print("KERNEL_OK")
</pallas_src>

<mosaic_0001>
module attributes {stable_mosaic.version = 11 : i64} {
  func.func @_fused_kernel(%arg0: i32, %arg1: memref<2x3x290xf32, #tpu.memory_space<vmem>>, %arg2: memref<16x32xf32, #tpu.memory_space<vmem>>, %arg3: memref<16x1xf32, #tpu.memory_space<vmem>>, %arg4: memref<16x1xf32, #tpu.memory_space<vmem>>, %arg5: memref<2x16x256xf32, #tpu.memory_space<vmem>>, %arg6: memref<32x256xf32, #tpu.memory_space<vmem>>) attributes {dimension_semantics = [#tpu.dimension_semantics<arbitrary>], iteration_bounds = array<i64: 1>, scalar_prefetch = 0 : i64, scratch_operands = 1 : i64, tpu.core_type = #tpu.core_type<tc>, window_params = [{pipeline_mode = #tpu.pipeline_mode<synchronous>, transform_indices = @transform_0, window_bounds = array<i64: 2, 3, 290>}, {pipeline_mode = #tpu.pipeline_mode<synchronous>, transform_indices = @transform_1, window_bounds = array<i64: 16, 32>}, {pipeline_mode = #tpu.pipeline_mode<synchronous>, transform_indices = @transform_2, window_bounds = array<i64: 16, 1>}, {pipeline_mode = #tpu.pipeline_mode<synchronous>, transform_indices = @transform_3, window_bounds = array<i64: 16, 1>}, {pipeline_mode = #tpu.pipeline_mode<synchronous>, transform_indices = @transform_4, window_bounds = array<i64: 2, 16, 256>}]} {
    %0 = tpu.iota {dimensions = array<i32: 1>} : vector<1x256xi32>
    %c16_i32 = arith.constant 16 : i32
    %c0_i32 = arith.constant 0 : i32
    %1 = arith.cmpi eq, %c16_i32, %c0_i32 : i32
    %c1_i32 = arith.constant 1 : i32
    %2 = arith.select %1, %c1_i32, %c16_i32 : i32
    %3 = vector.broadcast %2 : i32 to vector<1x256xi32>
    %4 = arith.remsi %0, %3 : vector<1x256xi32>
    %c0_i32_0 = arith.constant 0 : i32
    %5 = vector.broadcast %c0_i32_0 : i32 to vector<1x256xi32>
    %6 = arith.cmpi ne, %4, %5 : vector<1x256xi32>
    %c0_i32_1 = arith.constant 0 : i32
    %7 = vector.broadcast %c0_i32_1 : i32 to vector<1x256xi32>
    %8 = arith.cmpi slt, %4, %7 : vector<1x256xi32>
    %c0_i32_2 = arith.constant 0 : i32
    %9 = arith.cmpi slt, %2, %c0_i32_2 : i32
    %10 = vector.broadcast %9 : i1 to vector<1x256xi1>
    %11 = vector.broadcast %10 : vector<1x256xi1> to vector<1x256xi1>
    %12 = arith.xori %8, %11 : vector<1x256xi1>
    %13 = arith.andi %12, %6 : vector<1x256xi1>
    %14 = vector.broadcast %2 : i32 to vector<1x256xi32>
    %15 = arith.addi %4, %14 : vector<1x256xi32>
    %16 = arith.select %13, %15, %4 : vector<1x256xi1>, vector<1x256xi32>
    %c14_i32 = arith.constant 14 : i32
    %17 = vector.broadcast %c14_i32 : i32 to vector<1x256xi32>
    %18 = arith.cmpi slt, %16, %17 : vector<1x256xi32>
    %c224_i32 = arith.constant 224 : i32
    %19 = vector.broadcast %c224_i32 : i32 to vector<1x256xi32>
    %20 = arith.cmpi slt, %0, %19 : vector<1x256xi32>
    %21 = arith.andi %18, %20 : vector<1x256xi1>
    %22 = arith.extui %21 : vector<1x256xi1> to vector<1x256xi32>
    %23 = arith.sitofp %22 : vector<1x256xi32> to vector<1x256xf32>
    %cst = arith.constant 0.000000e+00 : f32
    %24 = vector.broadcast %cst : f32 to vector<32x256xf32>
    %c0 = arith.constant 0 : index
    %c0_3 = arith.constant 0 : index
    %25 = vector.load %arg6[%c0, %c0_3] : memref<32x256xf32, #tpu.memory_space<vmem>>, vector<32x256xf32>
    tpu.vector_store %arg6[%c0, %c0_3], %24 {strides = array<i32>} : memref<32x256xf32, #tpu.memory_space<vmem>>, vector<32x256xf32>,
    %cst_4 = arith.constant 1.000000e+00 : f32
    %26 = vector.broadcast %cst_4 : f32 to vector<1x256xf32>
    %c27 = arith.constant 27 : index
    %c0_5 = arith.constant 0 : index
    %27 = vector.load %arg6[%c27, %c0_5] : memref<32x256xf32, #tpu.memory_space<vmem>>, vector<1x256xf32>
    tpu.vector_store %arg6[%c27, %c0_5], %26 {strides = array<i32>} : memref<32x256xf32, #tpu.memory_space<vmem>>, vector<1x256xf32>,
    %c0_6 = arith.constant 0 : index
    %c0_7 = arith.constant 0 : index
    %28 = vector.load %arg2[%c0_6, %c0_7] : memref<16x32xf32, #tpu.memory_space<vmem>>, vector<16x32xf32>
    %cst_8 = arith.constant 0.000000e+00 : f32
    %29 = vector.broadcast %cst_8 : f32 to vector<16x1xf32>
    %cst_9 = arith.constant 0.000000e+00 : f32
    %30 = vector.broadcast %cst_9 : f32 to vector<16x1xf32>
    %c0_10 = arith.constant 0 : index
    %c0_11 = arith.constant 0 : index
    %c0_12 = arith.constant 0 : index
    %31 = vector.load %arg1[%c0_10, %c0_11, %c0_12] : memref<2x3x290xf32, #tpu.memory_space<vmem>>, vector<1x3x290xf32>
    %32 = vector.shape_cast %31 : vector<1x3x290xf32> to vector<3x290xf32>
    %33 = vector.extract_strided_slice %32 {offsets = [0, 0], sizes = [3, 256], strides = [1, 1]} : vector<3x290xf32> to vector<3x256xf32>
    %c0_13 = arith.constant 0 : index
    %c0_14 = arith.constant 0 : index
    %34 = vector.load %arg6[%c0_13, %c0_14] : memref<32x256xf32, #tpu.memory_space<vmem>>, vector<3x256xf32>
    tpu.vector_store %arg6[%c0_13, %c0_14], %33 {strides = array<i32>} : memref<32x256xf32, #tpu.memory_space<vmem>>, vector<3x256xf32>,
    %35 = vector.extract_strided_slice %32 {offsets = [0, 1], sizes = [3, 256], strides = [1, 1]} : vector<3x290xf32> to vector<3x256xf32>
    %c3 = arith.constant 3 : index
    %c0_15 = arith.constant 0 : index
    %36 = vector.load %arg6[%c3, %c0_15] : memref<32x256xf32, #tpu.memory_space<vmem>>, vector<3x256xf32>
    tpu.vector_store %arg6[%c3, %c0_15], %35 {strides = array<i32>} : memref<32x256xf32, #tpu.memory_space<vmem>>, vector<3x256xf32>,
    %37 = vector.extract_strided_slice %32 {offsets = [0, 2], sizes = [3, 256], strides = [1, 1]} : vector<3x290xf32> to vector<3x256xf32>
    %c6 = arith.constant 6 : index
    %c0_16 = arith.constant 0 : index
    %38 = vector.load %arg6[%c6, %c0_16] : memref<32x256xf32, #tpu.memory_space<vmem>>, vector<3x256xf32>
    tpu.vector_store %arg6[%c6, %c0_16], %37 {strides = array<i32>} : memref<32x256xf32, #tpu.memory_space<vmem>>, vector<3x256xf32>,
    %39 = vector.extract_strided_slice %32 {offsets = [0, 16], sizes = [3, 256], strides = [1, 1]} : vector<3x290xf32> to vector<3x256xf32>
    %c9 = arith.constant 9 : index
    %c0_17 = arith.constant 0 : index
    %40 = vector.load %arg6[%c9, %c0_17] : memref<32x256xf32, #tpu.memory_space<vmem>>, vector<3x256xf32>
    tpu.vector_store %arg6[%c9, %c0_17], %39 {strides = array<i32>} : memref<32x256xf32, #tpu.memory_space<vmem>>, vector<3x256xf32>,
    %41 = vector.extract_strided_slice %32 {offsets = [0, 17], sizes = [3, 256], strides = [1, 1]} : vector<3x290xf32> to vector<3x256xf32>
    %c12 = arith.constant 12 : index
    %c0_18 = arith.constant 0 : index
    %42 = vector.load %arg6[%c12, %c0_18] : memref<32x256xf32, #tpu.memory_space<vmem>>, vector<3x256xf32>
    tpu.vector_store %arg6[%c12, %c0_18], %41 {strides = array<i32>} : memref<32x256xf32, #tpu.memory_space<vmem>>, vector<3x256xf32>,
    %43 = vector.extract_strided_slice %32 {offsets = [0, 18], sizes = [3, 256], strides = [1, 1]} : vector<3x290xf32> to vector<3x256xf32>
    %c15 = arith.constant 15 : index
    %c0_19 = arith.constant 0 : index
    %44 = vector.load %arg6[%c15, %c0_19] : memref<32x256xf32, #tpu.memory_space<vmem>>, vector<3x256xf32>
    tpu.vector_store %arg6[%c15, %c0_19], %43 {strides = array<i32>} : memref<32x256xf32, #tpu.memory_space<vmem>>, vector<3x256xf32>,
    %45 = vector.extract_strided_slice %32 {offsets = [0, 32], sizes = [3, 256], strides = [1, 1]} : vector<3x290xf32> to vector<3x256xf32>
    %c18 = arith.constant 18 : index
    %c0_20 = arith.constant 0 : index
    %46 = vector.load %arg6[%c18, %c0_20] : memref<32x256xf32, #tpu.memory_space<vmem>>, vector<3x256xf32>
    tpu.vector_store %arg6[%c18, %c0_20], %45 {strides = array<i32>} : memref<32x256xf32, #tpu.memory_space<vmem>>, vector<3x256xf32>,
    %47 = vector.extract_strided_slice %32 {offsets = [0, 33], sizes = [3, 256], strides = [1, 1]} : vector<3x290xf32> to vector<3x256xf32>
    %c21 = arith.constant 21 : index
    %c0_21 = arith.constant 0 : index
    %48 = vector.load %arg6[%c21, %c0_21] : memref<32x256xf32, #tpu.memory_space<vmem>>, vector<3x256xf32>
    tpu.vector_store %arg6[%c21, %c0_21], %47 {strides = array<i32>} : memref<32x256xf32, #tpu.memory_space<vmem>>, vector<3x256xf32>,
    %49 = vector.extract_strided_slice %32 {offsets = [0, 34], sizes = [3, 256], strides = [1, 1]} : vector<3x290xf32> to vector<3x256xf32>
    %c24 = arith.constant 24 : index
    %c0_22 = arith.constant 0 : index
    %50 = vector.load %arg6[%c24, %c0_22] : memref<32x256xf32, #tpu.memory_space<vmem>>, vector<3x256xf32>
    tpu.vector_store %arg6[%c24, %c0_22], %49 {strides = array<i32>} : memref<32x256xf32, #tpu.memory_space<vmem>>, vector<3x256xf32>,
    %c0_23 = arith.constant 0 : index
    %c0_24 = arith.constant 0 : index
    %51 = vector.load %arg6[%c0_23, %c0_24] : memref<32x256xf32, #tpu.memory_space<vmem>>, vector<32x256xf32>
    %cst_25 = arith.constant dense<0.000000e+00> : vector<16x256xf32>
    %52 = tpu.matmul %28, %51, %cst_25 {dimension_numbers = #tpu.dot_dimension_numbers<[1], [0], [0], [1], [0, 0, 1, 1], [], []>} : vector<16x32xf32>, vector<32x256xf32>, vector<16x256xf32> -> vector<16x256xf32>
    %cst_26 = arith.constant 2.000000e+01 : f32
    %53 = vector.broadcast %cst_26 : f32 to vector<16x256xf32>
    %54 = arith.minimumf %52, %53 : vector<16x256xf32>
    %55 = math.exp %54 : vector<16x256xf32>
    %cst_27 = arith.constant 2.000000e+00 : f32
    %56 = vector.broadcast %cst_27 : f32 to vector<16x256xf32>
    %57 = arith.addf %55, %56 : vector<16x256xf32>
    %58 = arith.mulf %55, %57 : vector<16x256xf32>
    %cst_28 = arith.constant 2.000000e+01 : f32
    %59 = vector.broadcast %cst_28 : f32 to vector<16x256xf32>
    %60 = arith.cmpf ogt, %52, %59 : vector<16x256xf32>
    %cst_29 = arith.constant 2.000000e+00 : f32
    %61 = vector.broadcast %cst_29 : f32 to vector<16x256xf32>
    %62 = arith.addf %58, %61 : vector<16x256xf32>
    %63 = arith.divf %58, %62 : vector<16x256xf32>
    %64 = arith.mulf %52, %63 : vector<16x256xf32>
    %65 = arith.select %60, %52, %64 : vector<16x256xi1>, vector<16x256xf32>
    %c0_30 = arith.constant 0 : index
    %c0_31 = arith.constant 0 : index
    %c0_32 = arith.constant 0 : index
    %66 = vector.load %arg5[%c0_30, %c0_31, %c0_32] : memref<2x16x256xf32, #tpu.memory_space<vmem>>, vector<1x16x256xf32>
    %67 = vector.shape_cast %66 : vector<1x16x256xf32> to vector<16x256xf32>
    %68 = vector.shape_cast %65 : vector<16x256xf32> to vector<1x16x256xf32>
    tpu.vector_store %arg5[%c0_30, %c0_31, %c0_32], %68 {strides = array<i32>} : memref<2x16x256xf32, #tpu.memory_space<vmem>>, vector<1x16x256xf32>,
    %69 = vector.broadcast %23 : vector<1x256xf32> to vector<16x256xf32>
    %70 = arith.mulf %65, %69 : vector<16x256xf32>
    %cst_33 = arith.constant dense<0.000000e+00> : vector<16xf32>
    %71 = vector.multi_reduction <add>, %70, %cst_33 [1] : vector<16x256xf32> to vector<16xf32>
    %72 = vector.shape_cast %71 : vector<16xf32> to vector<16x1xf32>
    %73 = arith.addf %29, %72 : vector<16x1xf32>
    %74 = arith.mulf %70, %65 : vector<16x256xf32>
    %cst_34 = arith.constant dense<0.000000e+00> : vector<16xf32>
    %75 = vector.multi_reduction <add>, %74, %cst_34 [1] : vector<16x256xf32> to vector<16xf32>
    %76 = vector.shape_cast %75 : vector<16xf32> to vector<16x1xf32>
    %77 = arith.addf %30, %76 : vector<16x1xf32>
    %c1 = arith.constant 1 : index
    %c0_35 = arith.constant 0 : index
    %c0_36 = arith.constant 0 : index
    %78 = vector.load %arg1[%c1, %c0_35, %c0_36] : memref<2x3x290xf32, #tpu.memory_space<vmem>>, vector<1x3x290xf32>
    %79 = vector.shape_cast %78 : vector<1x3x290xf32> to vector<3x290xf32>
    %80 = vector.extract_strided_slice %79 {offsets = [0, 0], sizes = [3, 256], strides = [1, 1]} : vector<3x290xf32> to vector<3x256xf32>
    %c0_37 = arith.constant 0 : index
    %c0_38 = arith.constant 0 : index
    %81 = vector.load %arg6[%c0_37, %c0_38] : memref<32x256xf32, #tpu.memory_space<vmem>>, vector<3x256xf32>
    tpu.vector_store %arg6[%c0_37, %c0_38], %80 {strides = array<i32>} : memref<32x256xf32, #tpu.memory_space<vmem>>, vector<3x256xf32>,
    %82 = vector.extract_strided_slice %79 {offsets = [0, 1], sizes = [3, 256], strides = [1, 1]} : vector<3x290xf32> to vector<3x256xf32>
    %c3_39 = arith.constant 3 : index
    %c0_40 = arith.constant 0 : index
    %83 = vector.load %arg6[%c3_39, %c0_40] : memref<32x256xf32, #tpu.memory_space<vmem>>, vector<3x256xf32>
    tpu.vector_store %arg6[%c3_39, %c0_40], %82 {strides = array<i32>} : memref<32x256xf32, #tpu.memory_space<vmem>>, vector<3x256xf32>,
    %84 = vector.extract_strided_slice %79 {offsets = [0, 2], sizes = [3, 256], strides = [1, 1]} : vector<3x290xf32> to vector<3x256xf32>
    %c6_41 = arith.constant 6 : index
    %c0_42 = arith.constant 0 : index
    %85 = vector.load %arg6[%c6_41, %c0_42] : memref<32x256xf32, #tpu.memory_space<vmem>>, vector<3x256xf32>
    tpu.vector_store %arg6[%c6_41, %c0_42], %84 {strides = array<i32>} : memref<32x256xf32, #tpu.memory_space<vmem>>, vector<3x256xf32>,
    %86 = vector.extract_strided_slice %79 {offsets = [0, 16], sizes = [3, 256], strides = [1, 1]} : vector<3x290xf32> to vector<3x256xf32>
    %c9_43 = arith.constant 9 : index
    %c0_44 = arith.constant 0 : index
    %87 = vector.load %arg6[%c9_43, %c0_44] : memref<32x256xf32, #tpu.memory_space<vmem>>, vector<3x256xf32>
    tpu.vector_store %arg6[%c9_43, %c0_44], %86 {strides = array<i32>} : memref<32x256xf32, #tpu.memory_space<vmem>>, vector<3x256xf32>,
    %88 = vector.extract_strided_slice %79 {offsets = [0, 17], sizes = [3, 256], strides = [1, 1]} : vector<3x290xf32> to vector<3x256xf32>
    %c12_45 = arith.constant 12 : index
    %c0_46 = arith.constant 0 : index
    %89 = vector.load %arg6[%c12_45, %c0_46] : memref<32x256xf32, #tpu.memory_space<vmem>>, vector<3x256xf32>
    tpu.vector_store %arg6[%c12_45, %c0_46], %88 {strides = array<i32>} : memref<32x256xf32, #tpu.memory_space<vmem>>, vector<3x256xf32>,
    %90 = vector.extract_strided_slice %79 {offsets = [0, 18], sizes = [3, 256], strides = [1, 1]} : vector<3x290xf32> to vector<3x256xf32>
    %c15_47 = arith.constant 15 : index
    %c0_48 = arith.constant 0 : index
    %91 = vector.load %arg6[%c15_47, %c0_48] : memref<32x256xf32, #tpu.memory_space<vmem>>, vector<3x256xf32>
    tpu.vector_store %arg6[%c15_47, %c0_48], %90 {strides = array<i32>} : memref<32x256xf32, #tpu.memory_space<vmem>>, vector<3x256xf32>,
    %92 = vector.extract_strided_slice %79 {offsets = [0, 32], sizes = [3, 256], strides = [1, 1]} : vector<3x290xf32> to vector<3x256xf32>
    %c18_49 = arith.constant 18 : index
    %c0_50 = arith.constant 0 : index
    %93 = vector.load %arg6[%c18_49, %c0_50] : memref<32x256xf32, #tpu.memory_space<vmem>>, vector<3x256xf32>
    tpu.vector_store %arg6[%c18_49, %c0_50], %92 {strides = array<i32>} : memref<32x256xf32, #tpu.memory_space<vmem>>, vector<3x256xf32>,
    %94 = vector.extract_strided_slice %79 {offsets = [0, 33], sizes = [3, 256], strides = [1, 1]} : vector<3x290xf32> to vector<3x256xf32>
    %c21_51 = arith.constant 21 : index
    %c0_52 = arith.constant 0 : index
    %95 = vector.load %arg6[%c21_51, %c0_52] : memref<32x256xf32, #tpu.memory_space<vmem>>, vector<3x256xf32>
    tpu.vector_store %arg6[%c21_51, %c0_52], %94 {strides = array<i32>} : memref<32x256xf32, #tpu.memory_space<vmem>>, vector<3x256xf32>,
    %96 = vector.extract_strided_slice %79 {offsets = [0, 34], sizes = [3, 256], strides = [1, 1]} : vector<3x290xf32> to vector<3x256xf32>
    %c24_53 = arith.constant 24 : index
    %c0_54 = arith.constant 0 : index
    %97 = vector.load %arg6[%c24_53, %c0_54] : memref<32x256xf32, #tpu.memory_space<vmem>>, vector<3x256xf32>
    tpu.vector_store %arg6[%c24_53, %c0_54], %96 {strides = array<i32>} : memref<32x256xf32, #tpu.memory_space<vmem>>, vector<3x256xf32>,
    %c0_55 = arith.constant 0 : index
    %c0_56 = arith.constant 0 : index
    %98 = vector.load %arg6[%c0_55, %c0_56] : memref<32x256xf32, #tpu.memory_space<vmem>>, vector<32x256xf32>
    %cst_57 = arith.constant dense<0.000000e+00> : vector<16x256xf32>
    %99 = tpu.matmul %28, %98, %cst_57 {dimension_numbers = #tpu.dot_dimension_numbers<[1], [0], [0], [1], [0, 0, 1, 1], [], []>} : vector<16x32xf32>, vector<32x256xf32>, vector<16x256xf32> -> vector<16x256xf32>
    %cst_58 = arith.constant 2.000000e+01 : f32
    %100 = vector.broadcast %cst_58 : f32 to vector<16x256xf32>
    %101 = arith.minimumf %99, %100 : vector<16x256xf32>
    %102 = math.exp %101 : vector<16x256xf32>
    %cst_59 = arith.constant 2.000000e+00 : f32
    %103 = vector.broadcast %cst_59 : f32 to vector<16x256xf32>
    %104 = arith.addf %102, %103 : vector<16x256xf32>
    %105 = arith.mulf %102, %104 : vector<16x256xf32>
    %cst_60 = arith.constant 2.000000e+01 : f32
    %106 = vector.broadcast %cst_60 : f32 to vector<16x256xf32>
    %107 = arith.cmpf ogt, %99, %106 : vector<16x256xf32>
    %cst_61 = arith.constant 2.000000e+00 : f32
    %108 = vector.broadcast %cst_61 : f32 to vector<16x256xf32>
    %109 = arith.addf %105, %108 : vector<16x256xf32>
    %110 = arith.divf %105, %109 : vector<16x256xf32>
    %111 = arith.mulf %99, %110 : vector<16x256xf32>
    %112 = arith.select %107, %99, %111 : vector<16x256xi1>, vector<16x256xf32>
    %c1_62 = arith.constant 1 : index
    %c0_63 = arith.constant 0 : index
    %c0_64 = arith.constant 0 : index
    %113 = vector.load %arg5[%c1_62, %c0_63, %c0_64] : memref<2x16x256xf32, #tpu.memory_space<vmem>>, vector<1x16x256xf32>
    %114 = vector.shape_cast %113 : vector<1x16x256xf32> to vector<16x256xf32>
    %115 = vector.shape_cast %112 : vector<16x256xf32> to vector<1x16x256xf32>
    tpu.vector_store %arg5[%c1_62, %c0_63, %c0_64], %115 {strides = array<i32>} : memref<2x16x256xf32, #tpu.memory_space<vmem>>, vector<1x16x256xf32>,
    %116 = vector.broadcast %23 : vector<1x256xf32> to vector<16x256xf32>
    %117 = arith.mulf %112, %116 : vector<16x256xf32>
    %cst_65 = arith.constant dense<0.000000e+00> : vector<16xf32>
    %118 = vector.multi_reduction <add>, %117, %cst_65 [1] : vector<16x256xf32> to vector<16xf32>
    %119 = vector.shape_cast %118 : vector<16xf32> to vector<16x1xf32>
    %120 = arith.addf %73, %119 : vector<16x1xf32>
    %121 = arith.mulf %117, %112 : vector<16x256xf32>
    %cst_66 = arith.constant dense<0.000000e+00> : vector<16xf32>
    %122 = vector.multi_reduction <add>, %121, %cst_66 [1] : vector<16x256xf32> to vector<16xf32>
    %123 = vector.shape_cast %122 : vector<16xf32> to vector<16x1xf32>
    %124 = arith.addf %77, %123 : vector<16x1xf32>
    %cst_67 = arith.constant 3.920000e+02 : f32
    %125 = vector.broadcast %cst_67 : f32 to vector<16x1xf32>
    %126 = arith.divf %120, %125 : vector<16x1xf32>
    %cst_68 = arith.constant 3.920000e+02 : f32
    %127 = vector.broadcast %cst_68 : f32 to vector<16x1xf32>
    %128 = arith.divf %124, %127 : vector<16x1xf32>
    %129 = arith.mulf %126, %126 : vector<16x1xf32>
    %130 = arith.subf %128, %129 : vector<16x1xf32>
    %c0_69 = arith.constant 0 : index
    %c0_70 = arith.constant 0 : index
    %131 = vector.load %arg3[%c0_69, %c0_70] : memref<16x1xf32, #tpu.memory_space<vmem>>, vector<16x1xf32>
    %cst_71 = arith.constant 9.99999974E-6 : f32
    %132 = vector.broadcast %cst_71 : f32 to vector<16x1xf32>
    %133 = arith.addf %130, %132 : vector<16x1xf32>
    %134 = math.rsqrt %133 : vector<16x1xf32>
    %135 = arith.mulf %131, %134 : vector<16x1xf32>
    %c0_72 = arith.constant 0 : index
    %c0_73 = arith.constant 0 : index
    %136 = vector.load %arg4[%c0_72, %c0_73] : memref<16x1xf32, #tpu.memory_space<vmem>>, vector<16x1xf32>
    %137 = arith.mulf %126, %135 : vector<16x1xf32>
    %138 = arith.subf %136, %137 : vector<16x1xf32>
    %c0_74 = arith.constant 0 : index
    %c0_75 = arith.constant 0 : index
    %c0_76 = arith.constant 0 : index
    %139 = vector.load %arg5[%c0_74, %c0_75, %c0_76] : memref<2x16x256xf32, #tpu.memory_space<vmem>>, vector<1x16x256xf32>
    %140 = vector.shape_cast %139 : vector<1x16x256xf32> to vector<16x256xf32>
    %141 = vector.broadcast %135 : vector<16x1xf32> to vector<16x256xf32>
    %142 = arith.mulf %140, %141 : vector<16x256xf32>
    %143 = vector.broadcast %138 : vector<16x1xf32> to vector<16x256xf32>
    %144 = arith.addf %142, %143 : vector<16x256xf32>
    %c0_77 = arith.constant 0 : index
    %c0_78 = arith.constant 0 : index
    %c0_79 = arith.constant 0 : index
    %145 = vector.load %arg5[%c0_77, %c0_78, %c0_79] : memref<2x16x256xf32, #tpu.memory_space<vmem>>, vector<1x16x256xf32>
    %146 = vector.shape_cast %145 : vector<1x16x256xf32> to vector<16x256xf32>
    %147 = vector.shape_cast %144 : vector<16x256xf32> to vector<1x16x256xf32>
    tpu.vector_store %arg5[%c0_77, %c0_78, %c0_79], %147 {strides = array<i32>} : memref<2x16x256xf32, #tpu.memory_space<vmem>>, vector<1x16x256xf32>,
    %c1_80 = arith.constant 1 : index
    %c0_81 = arith.constant 0 : index
    %c0_82 = arith.constant 0 : index
    %148 = vector.load %arg5[%c1_80, %c0_81, %c0_82] : memref<2x16x256xf32, #tpu.memory_space<vmem>>, vector<1x16x256xf32>
    %149 = vector.shape_cast %148 : vector<1x16x256xf32> to vector<16x256xf32>
    %150 = vector.broadcast %135 : vector<16x1xf32> to vector<16x256xf32>
    %151 = arith.mulf %149, %150 : vector<16x256xf32>
    %152 = vector.broadcast %138 : vector<16x1xf32> to vector<16x256xf32>
    %153 = arith.addf %151, %152 : vector<16x256xf32>
    %c1_83 = arith.constant 1 : index
    %c0_84 = arith.constant 0 : index
    %c0_85 = arith.constant 0 : index
    %154 = vector.load %arg5[%c1_83, %c0_84, %c0_85] : memref<2x16x256xf32, #tpu.memory_space<vmem>>, vector<1x16x256xf32>
    %155 = vector.shape_cast %154 : vector<1x16x256xf32> to vector<16x256xf32>
    %156 = vector.shape_cast %153 : vector<16x256xf32> to vector<1x16x256xf32>
    tpu.vector_store %arg5[%c1_83, %c0_84, %c0_85], %156 {strides = array<i32>} : memref<2x16x256xf32, #tpu.memory_space<vmem>>, vector<1x16x256xf32>,
    return
  }
  func.func @transform_0(%arg0: i32) -> (i32, i32, i32) {
    %c0_i32 = arith.constant 0 : i32
    %c0_i32_0 = arith.constant 0 : i32
    %c0_i32_1 = arith.constant 0 : i32
    %c0_i32_2 = arith.constant 0 : i32
    return %c0_i32, %c0_i32_0, %c0_i32_1 : i32, i32, i32
  }
  func.func @transform_1(%arg0: i32) -> (i32, i32) {
    %c0_i32 = arith.constant 0 : i32
    %c0_i32_0 = arith.constant 0 : i32
    %c0_i32_1 = arith.constant 0 : i32
    return %c0_i32, %c0_i32_0 : i32, i32
  }
  func.func @transform_2(%arg0: i32) -> (i32, i32) {
    %c0_i32 = arith.constant 0 : i32
    %c0_i32_0 = arith.constant 0 : i32
    %c0_i32_1 = arith.constant 0 : i32
    return %c0_i32, %c0_i32_0 : i32, i32
  }
  func.func @transform_3(%arg0: i32) -> (i32, i32) {
    %c0_i32 = arith.constant 0 : i32
    %c0_i32_0 = arith.constant 0 : i32
    %c0_i32_1 = arith.constant 0 : i32
    return %c0_i32, %c0_i32_0 : i32, i32
  }
  func.func @transform_4(%arg0: i32) -> (i32, i32, i32) {
    %c0_i32 = arith.constant 0 : i32
    %c0_i32_0 = arith.constant 0 : i32
    %c0_i32_1 = arith.constant 0 : i32
    %c0_i32_2 = arith.constant 0 : i32
    return %c0_i32, %c0_i32_0, %c0_i32_1 : i32, i32, i32
  }
}

</mosaic_0001>

<llo_original>
// kernel: model_new_forward.1
$region0: #{model_new_forward.1}
  #allocation0 [shape = 'u32[]', space=smem, size = 0x4, offset = 0x4, fixed_abs, tag = 'smem constant byte address 0x4 - core index']
  #allocation1 [shape = 'u32[72,128]{1,0:T(1,128)}', space=vmem, size = 0x9000, scoped, tag = 'internal scratch']
  #allocation2 [shape = 'f32[32,256]{1,0:T(8,128)}', space=vmem, size = 0x8000, scoped, tag = 'scratch operand']
  %s0 = inlined_call_operand.vmem [shape: f32[2,3,290], index: 0, kind: input, shape index: {}]
  %s1 = inlined_call_operand.vmem [shape: f32[16,32], index: 1, kind: input, shape index: {}]
  %s2 = inlined_call_operand.vmem [shape: f32[16,1], index: 2, kind: input, shape index: {}]
  %s3 = inlined_call_operand.vmem [shape: f32[16,1], index: 3, kind: input, shape index: {}]
  %s4 = inlined_call_operand.vmem [shape: f32[2,16,256], index: 4, kind: output, shape index: {}]
  %s5 = sld [smem:[#allocation0]]
  $region26: #{model_new_forward.1} parent=0
    _
  %s7 = ssub.s32 1, %s5
  %s8 = scalar_select 0, %s7, %s5
  // Predicated region
  $region2: #{model_new_forward.1} parent=0 // pred_check
    _
  $region3: #{model_new_forward.1} parent=0 // pred_check_branch
    %10 = sbr.rel (0) target = $region5
  $region4: #{model_new_forward.1} parent=0 // pred_region
    _
  $region5: #{model_new_forward.1} parent=0 // pred_fallthru
    _
  // Predicated region
  $region6: #{model_new_forward.1} parent=0 // pred_check
    _
  $region7: #{model_new_forward.1} parent=0 // pred_check_branch
    %12 = sbr.rel (0) target = $region9
  $region8: #{model_new_forward.1} parent=0 // pred_region
    _
  $region9: #{model_new_forward.1} parent=0 // pred_fallthru
    _
  // Predicated region
  $region10: #{model_new_forward.1} parent=0 // pred_check
    _
  $region11: #{model_new_forward.1} parent=0 // pred_check_branch
    %14 = sbr.rel (0) target = $region13
  $region12: #{model_new_forward.1} parent=0 // pred_region
    _
  $region13: #{model_new_forward.1} parent=0 // pred_fallthru
    _
  // Predicated region
  $region14: #{model_new_forward.1} parent=0 // pred_check
    _
  $region15: #{model_new_forward.1} parent=0 // pred_check_branch
    %16 = sbr.rel (0) target = $region17
  $region16: #{model_new_forward.1} parent=0 // pred_region
    _
  $region17: #{model_new_forward.1} parent=0 // pred_fallthru
    _
  %v17 = vlaneseq
  %v18 = vand.u32 %v17, 127
  %v19 = vadd.s32 %v18, 128
  %vm20 = vcmp.lt.s32.totalorder %v18, 0
  %v21 = vsub.s32 0, %v18
  %v22 = vsel %vm20, %v21, %v18
  %v23 = vshrl.u32 %v22, 4
  %v24 = vand.u32 %v22, 15
  %v25 = vsub.s32 0, %v24
  %v26 = vsel %vm20, %v25, %v24
  %vm27 = vcmp.lt.s32.totalorder %v19, 0
  %v28 = vsub.s32 0, %v19
  %v29 = vsel %vm27, %v28, %v19
  %v30 = vshrl.u32 %v29, 4
  %v31 = vand.u32 %v29, 15
  %v32 = vsub.s32 0, %v31
  %v33 = vsel %vm27, %v32, %v31
  %vm34 = vcmp.ne.s32.totalorder %v26, 0
  %vm35 = vcmp.ne.s32.totalorder %v33, 0
  %vm36 = vcmp.lt.s32.totalorder %v26, 0
  %vm37 = vcmp.lt.s32.totalorder %v33, 0
  %vm38 = vmand %vm36, %vm34
  %vm39 = vmand %vm37, %vm35
  %v40 = vadd.s32 %v26, 16
  %v41 = vadd.s32 %v33, 16
  %v42 = vsel %vm38, %v40, %v26
  %v43 = vsel %vm39, %v41, %v33
  %vm44 = vcmp.lt.s32.totalorder %v42, 14
  %vm45 = vcmp.lt.s32.totalorder %v43, 14
  %vm46 = vcmp.lt.s32.totalorder %v18, 224
  %vm47 = vcmp.lt.s32.totalorder %v19, 224
  %vm48 = vmand %vm44, %vm46
  %vm49 = vmand %vm45, %vm47
  %v50 = vsel %vm48, 1, 0
  %v51 = vsel %vm49, 1, 0
  %v52 = vcvt.s32.f32 %v50
  %v53 = vcvt.s32.f32 %v51
  %54 = vst [vmem:[#allocation2] sm:$0xff] 0.0
  %55 = vst [vmem:[#allocation2 + $0x8] sm:$0xff] 0.0
  %56 = vst [vmem:[#allocation2 + $0x10] sm:$0xff] 0.0
  %57 = vst [vmem:[#allocation2 + $0x18] sm:$0xff] 0.0
  %58 = vst [vmem:[#allocation2 + $0x20] sm:$0xff] 0.0
  %59 = vst [vmem:[#allocation2 + $0x28] sm:$0xff] 0.0
  %60 = vst [vmem:[#allocation2 + $0x30] sm:$0xff] 0.0
  %61 = vst [vmem:[#allocation2 + $0x38] sm:$0xff] 0.0
  %v62 = vlaneseq
  %vm63 = vcmp.ge.s32.totalorder %v62, 0
  %vm64 = vcmp.lt.s32.totalorder %v62, 256
  %vm65 = vmand %vm63, %vm64
  %s66 = scalar_lea.vmem [#allocation2], 51
  %67 = vst.msk [vmem:[%s66] ss:$8 sm:$0x3] %vm65, 1.0
  %68 = vst.msk [vmem:[%s66] ss:$8 sm:$0x0] %vm65, 1.0
  %v69 = vld [vmem:[%s1] sm:$0xff]
  %v70 = vld [vmem:[%s1 + $0x8] sm:$0xff]
  %v71 = vld [vmem:[%s0] sm:$0x77]
  %v72 = vld [vmem:[%s0 + $0x8] sm:$0x7]
  %74 = vst [vmem:[#allocation1] ss:$2 sm:$0xff] %v71
  %v75 = vld.sshfl [vmem:[#allocation1] sm:$0xff pattern:$0x75316420]
  %v76 = vld.sshfl [vmem:[#allocation1 + $0x8] sm:$0xff pattern:$0x75316420]
  %79 = vst [vmem:[#allocation2] sm:$0x7] %v75
  %80 = vst [vmem:[#allocation2 + $0x8] sm:$0x7] %v76
  %82 = vst [vmem:[#allocation1] ss:$2 sm:$0xff] %v71
  %s83 = scalar_lea.vmem [#allocation1], 16
  %84 = vst [vmem:[%s83] ss:$2 sm:$0xff] %v72
  %v85 = vld.sshfl [vmem:[#allocation1] sm:$0xff pattern:$0x75316420]
  %v86 = vld.sshfl [vmem:[#allocation1 + $0x8] sm:$0xff pattern:$0x75316420]
  %v87 = vld.sshfl [vmem:[#allocation1 + $0x10] sm:$0xff pattern:$0x75316420]
  %v88 = vrot.slane %v85, 5
  %v89 = vrot.slane %v86, 5
  %v90 = vrot.slane %v87, 5
  %91 = vrot.lane.b32.xlu0 %v88, 127
  %v92 = vpop.permute.xlu0 %91
  %93 = vrot.lane.b32.xlu0 %v89, 127
  %v94 = vpop.permute.xlu0 %93
  %95 = vrot.lane.b32.xlu0 %v90, 127
  %v96 = vpop.permute.xlu0 %95
  %vm97 = vcmask 1039360
  %v98 = vsel %vm97, %v92, %v94
  %v99 = vsel %vm97, %v94, %v96
  %102 = vst [vmem:[#allocation2] sm:$0x38] %v98
  %103 = vst [vmem:[#allocation2 + $0x8] sm:$0x38] %v99
  %104 = vst [vmem:[#allocation1] ss:$2 sm:$0xff] %v71
  %s105 = scalar_lea.vmem [#allocation1], 16
  %106 = vst [vmem:[%s105] ss:$2 sm:$0xff] %v72
  %v107 = vld.sshfl [vmem:[#allocation1] sm:$0xff pattern:$0x75316420]
  %v108 = vld.sshfl [vmem:[#allocation1 + $0x8] sm:$0xff pattern:$0x75316420]
  %v109 = vld.sshfl [vmem:[#allocation1 + $0x10] sm:$0xff pattern:$0x75316420]
  %v110 = vrot.slane %v107, 2
  %v111 = vrot.slane %v108, 2
  %v112 = vrot.slane %v109, 2
  %113 = vrot.lane.b32.xlu0 %v110, 126
  %v114 = vpop.permute.xlu0 %113
  %115 = vrot.lane.b32.xlu0 %v111, 126
  %v116 = vpop.permute.xlu0 %115
  %117 = vrot.lane.b32.xlu0 %v112, 126
  %v118 = vpop.permute.xlu0 %117
  %vm119 = vcmask 1031168
  %v120 = vsel %vm119, %v114, %v116
  %v121 = vsel %vm119, %v116, %v118
  %124 = vst [vmem:[#allocation2] sm:$0xc0] %v120
  %125 = vst [vmem:[#allocation2 + $0x8] sm:$0xc0] %v121
  %126 = vst [vmem:[#allocation2 + $0x10] sm:$0x1] %v120
  %127 = vst [vmem:[#allocation2 + $0x18] sm:$0x1] %v121
  %128 = vst [vmem:[#allocation1] ss:$2 sm:$0xff] %v71
  %s129 = scalar_lea.vmem [#allocation1], 16
  %130 = vst [vmem:[%s129] ss:$2 sm:$0xff] %v72
  %v131 = vld.sshfl [vmem:[#allocation1] sm:$0xff pattern:$0x75316420]
  %v132 = vld.sshfl [vmem:[#allocation1 + $0x8] sm:$0xff pattern:$0x75316420]
  %v133 = vld.sshfl [vmem:[#allocation1 + $0x10] sm:$0xff pattern:$0x75316420]
  %v134 = vrot.slane %v131, 7
  %v135 = vrot.slane %v132, 7
  %v136 = vrot.slane %v133, 7
  %137 = vrot.lane.b32.xlu0 %v134, 112
  %v138 = vpop.permute.xlu0 %137
  %139 = vrot.lane.b32.xlu0 %v135, 112
  %v140 = vpop.permute.xlu0 %139
  %141 = vrot.lane.b32.xlu0 %v136, 112
  %v142 = vpop.permute.xlu0 %141
  %vm143 = vcmask 916480
  %v144 = vsel %vm143, %v138, %v140
  %v145 = vsel %vm143, %v140, %v142
  %148 = vst [vmem:[#allocation2 + $0x10] sm:$0xe] %v144
  %149 = vst [vmem:[#allocation2 + $0x18] sm:$0xe] %v145
  %s150 = scalar_lea.vmem [#allocation1], 1
  %151 = vst [vmem:[%s150] ss:$2 sm:$0xff] %v71
  %s152 = scalar_lea.vmem [#allocation1], 17
  %153 = vst [vmem:[%s152] ss:$2 sm:$0xff] %v72
  %v154 = vld.sshfl [vmem:[#allocation1] sm:$0xff pattern:$0x75316420]
  %v155 = vld.sshfl [vmem:[#allocation1 + $0x8] sm:$0xff pattern:$0x75316420]
  %v156 = vld.sshfl [vmem:[#allocation1 + $0x10] sm:$0xff pattern:$0x75316420]
  %157 = vrot.lane.b32.xlu0 %v154, 111
  %v158 = vpop.permute.xlu0 %157
  %159 = vrot.lane.b32.xlu0 %v155, 111
  %v160 = vpop.permute.xlu0 %159
  %161 = vrot.lane.b32.xlu0 %v156, 111
  %v162 = vpop.permute.xlu0 %161
  %vm163 = vcmask 908288
  %v164 = vsel %vm163, %v158, %v160
  %v165 = vsel %vm163, %v160, %v162
  %168 = vst [vmem:[#allocation2 + $0x10] sm:$0x70] %v164
  %169 = vst [vmem:[#allocation2 + $0x18] sm:$0x70] %v165
  %170 = vst [vmem:[#allocation1] ss:$2 sm:$0xff] %v71
  %s171 = scalar_lea.vmem [#allocation1], 16
  %172 = vst [vmem:[%s171] ss:$2 sm:$0xff] %v72
  %v173 = vld.sshfl [vmem:[#allocation1] sm:$0xff pattern:$0x75316420]
  %v174 = vld.sshfl [vmem:[#allocation1 + $0x8] sm:$0xff pattern:$0x75316420]
  %v175 = vld.sshfl [vmem:[#allocation1 + $0x10] sm:$0xff pattern:$0x75316420]
  %v176 = vrot.slane %v173, 1
  %v177 = vrot.slane %v174, 1
  %v178 = vrot.slane %v175, 1
  %179 = vrot.lane.b32.xlu0 %v176, 110
  %v180 = vpop.permute.xlu0 %179
  %181 = vrot.lane.b32.xlu0 %v177, 110
  %v182 = vpop.permute.xlu0 %181
  %183 = vrot.lane.b32.xlu0 %v178, 110
  %v184 = vpop.permute.xlu0 %183
  %vm185 = vcmask 900096
  %v186 = vsel %vm185, %v180, %v182
  %v187 = vsel %vm185, %v182, %v184
  %190 = vst [vmem:[#allocation2 + $0x10] sm:$0x80] %v186
  %191 = vst [vmem:[#allocation2 + $0x18] sm:$0x80] %v187
  %192 = vst [vmem:[#allocation2 + $0x20] sm:$0x3] %v186
  %193 = vst [vmem:[#allocation2 + $0x28] sm:$0x3] %v187
  %194 = vst [vmem:[#allocation1] ss:$2 sm:$0xff] %v71
  %s195 = scalar_lea.vmem [#allocation1], 16
  %196 = vst [vmem:[%s195] ss:$2 sm:$0xff] %v72
  %v197 = vld.sshfl [vmem:[#allocation1] sm:$0xff pattern:$0x75316420]
  %v198 = vld.sshfl [vmem:[#allocation1 + $0x8] sm:$0xff pattern:$0x75316420]
  %v199 = vld.sshfl [vmem:[#allocation1 + $0x10] sm:$0xff pattern:$0x75316420]
  %v200 = vrot.slane %v197, 6
  %v201 = vrot.slane %v198, 6
  %v202 = vrot.slane %v199, 6
  %203 = vrot.lane.b32.xlu0 %v200, 96
  %v204 = vpop.permute.xlu0 %203
  %205 = vrot.lane.b32.xlu0 %v201, 96
  %v206 = vpop.permute.xlu0 %205
  %207 = vrot.lane.b32.xlu0 %v202, 96
  %v208 = vpop.permute.xlu0 %207
  %vm209 = vcmask 785408
  %v210 = vsel %vm209, %v204, %v206
  %v211 = vsel %vm209, %v206, %v208
  %214 = vst [vmem:[#allocation2 + $0x20] sm:$0x1c] %v210
  %215 = vst [vmem:[#allocation2 + $0x28] sm:$0x1c] %v211
  %216 = vst [vmem:[#allocation1] ss:$2 sm:$0xff] %v71
  %s217 = scalar_lea.vmem [#allocation1], 16
  %218 = vst [vmem:[%s217] ss:$2 sm:$0xff] %v72
  %v219 = vld.sshfl [vmem:[#allocation1] sm:$0xff pattern:$0x75316420]
  %v220 = vld.sshfl [vmem:[#allocation1 + $0x8] sm:$0xff pattern:$0x75316420]
  %v221 = vld.sshfl [vmem:[#allocation1 + $0x10] sm:$0xff pattern:$0x75316420]
  %v222 = vrot.slane %v219, 3
  %v223 = vrot.slane %v220, 3
  %v224 = vrot.slane %v221, 3
  %225 = vrot.lane.b32.xlu0 %v222, 95
  %v226 = vpop.permute.xlu0 %225
  %227 = vrot.lane.b32.xlu0 %v223, 95
  %v228 = vpop.permute.xlu0 %227
  %229 = vrot.lane.b32.xlu0 %v224, 95
  %v230 = vpop.permute.xlu0 %229
  %vm231 = vcmask 777216
  %v232 = vsel %vm231, %v226, %v228
  %v233 = vsel %vm231, %v228, %v230
  %236 = vst [vmem:[#allocation2 + $0x20] sm:$0xe0] %v232
  %237 = vst [vmem:[#allocation2 + $0x28] sm:$0xe0] %v233
  %238 = vst [vmem:[#allocation1] ss:$2 sm:$0xff] %v71
  %s239 = scalar_lea.vmem [#allocation1], 16
  %240 = vst [vmem:[%s239] ss:$2 sm:$0xff] %v72
  %v241 = vld.sshfl [vmem:[#allocation1] sm:$0xff pattern:$0x75316420]
  %v242 = vld.sshfl [vmem:[#allocation1 + $0x8] sm:$0xff pattern:$0x75316420]
  %v243 = vld.sshfl [vmem:[#allocation1 + $0x10] sm:$0xff pattern:$0x75316420]
  %244 = vrot.lane.b32.xlu0 %v241, 94
  %v245 = vpop.permute.xlu0 %244
  %246 = vrot.lane.b32.xlu0 %v242, 94
  %v247 = vpop.permute.xlu0 %246
  %248 = vrot.lane.b32.xlu0 %v243, 94
  %v249 = vpop.permute.xlu0 %248
  %vm250 = vcmask 769024
  %v251 = vsel %vm250, %v245, %v247
  %v252 = vsel %vm250, %v247, %v249
  %255 = vst [vmem:[#allocation2 + $0x30] sm:$0x7] %v251
  %256 = vst [vmem:[#allocation2 + $0x38] sm:$0x7] %v252
  %v257 = vld [vmem:[#allocation2] sm:$0xff]
  %v258 = vld [vmem:[#allocation2 + $0x8] sm:$0xff]
  %v259 = vld [vmem:[#allocation2 + $0x10] sm:$0xff]
  %v260 = vld [vmem:[#allocation2 + $0x18] sm:$0xff]
  %v261 = vld [vmem:[#allocation2 + $0x20] sm:$0xff]
  %v262 = vld [vmem:[#allocation2 + $0x28] sm:$0xff]
  %v263 = vld [vmem:[#allocation2 + $0x30] sm:$0xff]
  %v264 = vld [vmem:[#allocation2 + $0x38] sm:$0xff]
  %vm265 = vcmask 261120
  %v267 = vsel %vm265, %v69, 0
  %v270 = vsel %vm265, %v70, 0
  %272 = vmatpush.msra.mxu0 0.0
  %273 = vmatpush.msra.mxu0 0.0
  %274 = vmatpush.msra.mxu0 0.0
  %275 = vmatpush.msra.mxu0 0.0
  %276 = vmatpush.msra.mxu0 0.0
  %277 = vmatpush.msra.mxu0 0.0
  %278 = vmatpush.msra.mxu0 0.0
  %279 = vmatpush.msra.mxu0 0.0
  %280 = vmatpush.msra.mxu0 0.0
  %281 = vmatpush.msra.mxu0 0.0
  %282 = vmatpush.msra.mxu0 0.0
  %283 = vmatpush.msra.mxu0 0.0
  %284 = vmatpush.msra.mxu0 %v263
  %285 = vmatpush.msra.mxu0 %v261
  %286 = vmatpush.msra.mxu0 %v259
  %287 = vmatpush.msra.mxu0 %v257
  %288 = vmatmul.f32.gmra.mxu0 %v267
  %v289 = vpop.f32.mrf.mxu0
  %v290 = vadd.f32 0.0, %v289
  %291 = vmatmul.f32.gmra.mxu0 %v270
  %v292 = vpop.f32.mrf.mxu0
  %v293 = vadd.f32 0.0, %v292
  %294 = vdwg.mxu0
  %295 = vmatpush.msra.mxu0 0.0
  %296 = vmatpush.msra.mxu0 0.0
  %297 = vmatpush.msra.mxu0 0.0
  %298 = vmatpush.msra.mxu0 0.0
  %299 = vmatpush.msra.mxu0 0.0
  %300 = vmatpush.msra.mxu0 0.0
  %301 = vmatpush.msra.mxu0 0.0
  %302 = vmatpush.msra.mxu0 0.0
  %303 = vmatpush.msra.mxu0 0.0
  %304 = vmatpush.msra.mxu0 0.0
  %305 = vmatpush.msra.mxu0 0.0
  %306 = vmatpush.msra.mxu0 0.0
  %307 = vmatpush.msra.mxu0 %v264
  %308 = vmatpush.msra.mxu0 %v262
  %309 = vmatpush.msra.mxu0 %v260
  %310 = vmatpush.msra.mxu0 %v258
  %311 = vmatmul.f32.gmra.mxu0 %v267
  %v312 = vpop.f32.mrf.mxu0
  %v313 = vadd.f32 0.0, %v312
  %314 = vmatmul.f32.gmra.mxu0 %v270
  %v315 = vpop.f32.mrf.mxu0
  %v316 = vadd.f32 0.0, %v315
  %317 = vdwg.mxu0
  %v318 = vmin.f32 %v290, 20.0
  %v319 = vmin.f32 %v313, 20.0
  %v320 = vmin.f32 %v293, 20.0
  %v321 = vmin.f32 %v316, 20.0
  %v322 = vmul.f32 %v318, 1.442695
  %v323 = vpow.pop %v322
  %v324 = vmul.f32 %v319, 1.442695
  %v325 = vpow.pop %v324
  %v326 = vmul.f32 %v320, 1.442695
  %v327 = vpow.pop %v326
  %v328 = vmul.f32 %v321, 1.442695
  %v329 = vpow.pop %v328
  %v330 = vadd.f32 %v323, 2.0
  %v331 = vadd.f32 %v325, 2.0
  %v332 = vadd.f32 %v327, 2.0
  %v333 = vadd.f32 %v329, 2.0
  %v334 = vmul.f32 %v323, %v330
  %v335 = vmul.f32 %v325, %v331
  %v336 = vmul.f32 %v327, %v332
  %v337 = vmul.f32 %v329, %v333
  %vm338 = vcmp.gt.f32.partialorder %v290, 20.0
  %vm339 = vcmp.gt.f32.partialorder %v313, 20.0
  %vm340 = vcmp.gt.f32.partialorder %v293, 20.0
  %vm341 = vcmp.gt.f32.partialorder %v316, 20.0
  %v342 = vadd.f32 %v334, 2.0
  %v343 = vadd.f32 %v335, 2.0
  %v344 = vadd.f32 %v336, 2.0
  %v345 = vadd.f32 %v337, 2.0
  %v346 = vrcp.pop %v342
  %v347 = vmul.f32 %v342, %v346
  %v348 = vsub.f32 1.0, %v347
  %v349 = vmul.f32 %v346, %v348
  %v350 = vadd.f32 %v346, %v349
  %vm351 = vweird.f32 %v342
  %vm352 = vweird.f32 %v346
  %vm353 = vmor %vm351, %vm352
  %v354 = vsel %vm353, %v346, %v350
  %v355 = vand.u32 2147483647, %v342
  %vm356 = vcmp.eq.f32.partialorder %v355, 8.507059e+37
  %v357 = vand.u32 %v342, 2147483648
  %v358 = vor.u32 1.1754944e-38, %v357
  %v359 = vsel %vm356, %v358, %v354
  %v360 = vmul.f32 %v334, %v359
  %v361 = vrcp.pop %v343
  %v362 = vmul.f32 %v343, %v361
  %v363 = vsub.f32 1.0, %v362
  %v364 = vmul.f32 %v361, %v363
  %v365 = vadd.f32 %v361, %v364
  %vm366 = vweird.f32 %v343
  %vm367 = vweird.f32 %v361
  %vm368 = vmor %vm366, %vm367
  %v369 = vsel %vm368, %v361, %v365
  %v370 = vand.u32 2147483647, %v343
  %vm371 = vcmp.eq.f32.partialorder %v370, 8.507059e+37
  %v372 = vand.u32 %v343, 2147483648
  %v373 = vor.u32 1.1754944e-38, %v372
  %v374 = vsel %vm371, %v373, %v369
  %v375 = vmul.f32 %v335, %v374
  %v376 = vrcp.pop %v344
  %v377 = vmul.f32 %v344, %v376
  %v378 = vsub.f32 1.0, %v377
  %v379 = vmul.f32 %v376, %v378
  %v380 = vadd.f32 %v376, %v379
  %vm381 = vweird.f32 %v344
  %vm382 = vweird.f32 %v376
  %vm383 = vmor %vm381, %vm382
  %v384 = vsel %vm383, %v376, %v380
  %v385 = vand.u32 2147483647, %v344
  %vm386 = vcmp.eq.f32.partialorder %v385, 8.507059e+37
  %v387 = vand.u32 %v344, 2147483648
  %v388 = vor.u32 1.1754944e-38, %v387
  %v389 = vsel %vm386, %v388, %v384
  %v390 = vmul.f32 %v336, %v389
  %v391 = vrcp.pop %v345
  %v392 = vmul.f32 %v345, %v391
  %v393 = vsub.f32 1.0, %v392
  %v394 = vmul.f32 %v391, %v393
  %v395 = vadd.f32 %v391, %v394
  %vm396 = vweird.f32 %v345
  %vm397 = vweird.f32 %v391
  %vm398 = vmor %vm396, %vm397
  %v399 = vsel %vm398, %v391, %v395
  %v400 = vand.u32 2147483647, %v345
  %vm401 = vcmp.eq.f32.partialorder %v400, 8.507059e+37
  %v402 = vand.u32 %v345, 2147483648
  %v403 = vor.u32 1.1754944e-38, %v402
  %v404 = vsel %vm401, %v403, %v399
  %v405 = vmul.f32 %v337, %v404
  %v406 = vmul.f32 %v290, %v360
  %v407 = vmul.f32 %v313, %v375
  %v408 = vmul.f32 %v293, %v390
  %v409 = vmul.f32 %v316, %v405
  %v410 = vsel %vm338, %v290, %v406
  %v411 = vsel %vm339, %v313, %v407
  %v412 = vsel %vm340, %v293, %v408
  %v413 = vsel %vm341, %v316, %v409
  %414 = vst [vmem:[%s4] sm:$0xff] %v410
  %415 = vst [vmem:[%s4 + $0x8] sm:$0xff] %v411
  %416 = vst [vmem:[%s4 + $0x10] sm:$0xff] %v412
  %417 = vst [vmem:[%s4 + $0x18] sm:$0xff] %v413
  %v418 = vmul.f32 %v410, %v52
  %v419 = vmul.f32 %v411, %v53
  %v420 = vmul.f32 %v412, %v52
  %v421 = vmul.f32 %v413, %v53
  %v422 = vadd.f32 %v418, %v419
  %423 = vadd.xlane.f32.xlu0 %v422
  %v424 = vpop.xlane.xlu0 %423
  %v425 = vadd.f32 %v420, %v421
  %426 = vadd.xlane.f32.xlu0 %v425
  %v427 = vpop.xlane.xlu0 %426
  %v428 = vadd.f32 %v424, 0.0
  %v429 = vadd.f32 %v427, 0.0
  %v430 = vmul.f32 %v418, %v410
  %v431 = vmul.f32 %v419, %v411
  %v432 = vmul.f32 %v420, %v412
  %v433 = vmul.f32 %v421, %v413
  %v434 = vadd.f32 %v430, %v431
  %435 = vadd.xlane.f32.xlu0 %v434
  %v436 = vpop.xlane.xlu0 %435
  %v437 = vadd.f32 %v432, %v433
  %438 = vadd.xlane.f32.xlu0 %v437
  %v439 = vpop.xlane.xlu0 %438
  %v440 = vadd.f32 %v436, 0.0
  %v441 = vadd.f32 %v439, 0.0
  %s442 = scalar_lea.vmem %s0, 12
  %v443 = vld [vmem:[%s442] sm:$0x77]
  %v444 = vld [vmem:[%s442 + $0x8] sm:$0x7]
  %446 = vst [vmem:[#allocation1] ss:$2 sm:$0xff] %v443
  %v447 = vld.sshfl [vmem:[#allocation1] sm:$0xff pattern:$0x75316420]
  %v448 = vld.sshfl [vmem:[#allocation1 + $0x8] sm:$0xff pattern:$0x75316420]
  %451 = vst [vmem:[#allocation2] sm:$0x7] %v447
  %452 = vst [vmem:[#allocation2 + $0x8] sm:$0x7] %v448
  %454 = vst [vmem:[#allocation1] ss:$2 sm:$0xff] %v443
  %s455 = scalar_lea.vmem [#allocation1], 16
  %456 = vst [vmem:[%s455] ss:$2 sm:$0xff] %v444
  %v457 = vld.sshfl [vmem:[#allocation1] sm:$0xff pattern:$0x75316420]
  %v458 = vld.sshfl [vmem:[#allocation1 + $0x8] sm:$0xff pattern:$0x75316420]
  %v459 = vld.sshfl [vmem:[#allocation1 + $0x10] sm:$0xff pattern:$0x75316420]
  %v460 = vrot.slane %v457, 5
  %v461 = vrot.slane %v458, 5
  %v462 = vrot.slane %v459, 5
  %463 = vrot.lane.b32.xlu0 %v460, 127
  %v464 = vpop.permute.xlu0 %463
  %465 = vrot.lane.b32.xlu0 %v461, 127
  %v466 = vpop.permute.xlu0 %465
  %467 = vrot.lane.b32.xlu0 %v462, 127
  %v468 = vpop.permute.xlu0 %467
  %v469 = vsel %vm97, %v464, %v466
  %v470 = vsel %vm97, %v466, %v468
  %473 = vst [vmem:[#allocation2] sm:$0x38] %v469
  %474 = vst [vmem:[#allocation2 + $0x8] sm:$0x38] %v470
  %475 = vst [vmem:[#allocation1] ss:$2 sm:$0xff] %v443
  %s476 = scalar_lea.vmem [#allocation1], 16
  %477 = vst [vmem:[%s476] ss:$2 sm:$0xff] %v444
  %v478 = vld.sshfl [vmem:[#allocation1] sm:$0xff pattern:$0x75316420]
  %v479 = vld.sshfl [vmem:[#allocation1 + $0x8] sm:$0xff pattern:$0x75316420]
  %v480 = vld.sshfl [vmem:[#allocation1 + $0x10] sm:$0xff pattern:$0x75316420]
  %v481 = vrot.slane %v478, 2
  %v482 = vrot.slane %v479, 2
  %v483 = vrot.slane %v480, 2
  %484 = vrot.lane.b32.xlu0 %v481, 126
  %v485 = vpop.permute.xlu0 %484
  %486 = vrot.lane.b32.xlu0 %v482, 126
  %v487 = vpop.permute.xlu0 %486
  %488 = vrot.lane.b32.xlu0 %v483, 126
  %v489 = vpop.permute.xlu0 %488
  %v490 = vsel %vm119, %v485, %v487
  %v491 = vsel %vm119, %v487, %v489
  %494 = vst [vmem:[#allocation2] sm:$0xc0] %v490
  %495 = vst [vmem:[#allocation2 + $0x8] sm:$0xc0] %v491
  %496 = vst [vmem:[#allocation2 + $0x10] sm:$0x1] %v490
  %497 = vst [vmem:[#allocation2 + $0x18] sm:$0x1] %v491
  %498 = vst [vmem:[#allocation1] ss:$2 sm:$0xff] %v443
  %s499 = scalar_lea.vmem [#allocation1], 16
  %500 = vst [vmem:[%s499] ss:$2 sm:$0xff] %v444
  %v501 = vld.sshfl [vmem:[#allocation1] sm:$0xff pattern:$0x75316420]
  %v502 = vld.sshfl [vmem:[#allocation1 + $0x8] sm:$0xff pattern:$0x75316420]
  %v503 = vld.sshfl [vmem:[#allocation1 + $0x10] sm:$0xff pattern:$0x75316420]
  %v504 = vrot.slane %v501, 7
  %v505 = vrot.slane %v502, 7
  %v506 = vrot.slane %v503, 7
  %507 = vrot.lane.b32.xlu0 %v504, 112
  %v508 = vpop.permute.xlu0 %507
  %509 = vrot.lane.b32.xlu0 %v505, 112
  %v510 = vpop.permute.xlu0 %509
  %511 = vrot.lane.b32.xlu0 %v506, 112
  %v512 = vpop.permute.xlu0 %511
  %v513 = vsel %vm143, %v508, %v510
  %v514 = vsel %vm143, %v510, %v512
  %517 = vst [vmem:[#allocation2 + $0x10] sm:$0xe] %v513
  %518 = vst [vmem:[#allocation2 + $0x18] sm:$0xe] %v514
  %s519 = scalar_lea.vmem [#allocation1], 1
  %520 = vst [vmem:[%s519] ss:$2 sm:$0xff] %v443
  %s521 = scalar_lea.vmem [#allocation1], 17
  %522 = vst [vmem:[%s521] ss:$2 sm:$0xff] %v444
  %v523 = vld.sshfl [vmem:[#allocation1] sm:$0xff pattern:$0x75316420]
  %v524 = vld.sshfl [vmem:[#allocation1 + $0x8] sm:$0xff pattern:$0x75316420]
  %v525 = vld.sshfl [vmem:[#allocation1 + $0x10] sm:$0xff pattern:$0x75316420]
  %526 = vrot.lane.b32.xlu0 %v523, 111
  %v527 = vpop.permute.xlu0 %526
  %528 = vrot.lane.b32.xlu0 %v524, 111
  %v529 = vpop.permute.xlu0 %528
  %530 = vrot.lane.b32.xlu0 %v525, 111
  %v531 = vpop.permute.xlu0 %530
  %v532 = vsel %vm163, %v527, %v529
  %v533 = vsel %vm163, %v529, %v531
  %536 = vst [vmem:[#allocation2 + $0x10] sm:$0x70] %v532
  %537 = vst [vmem:[#allocation2 + $0x18] sm:$0x70] %v533
  %538 = vst [vmem:[#allocation1] ss:$2 sm:$0xff] %v443
  %s539 = scalar_lea.vmem [#allocation1], 16
  %540 = vst [vmem:[%s539] ss:$2 sm:$0xff] %v444
  %v541 = vld.sshfl [vmem:[#allocation1] sm:$0xff pattern:$0x75316420]
  %v542 = vld.sshfl [vmem:[#allocation1 + $0x8] sm:$0xff pattern:$0x75316420]
  %v543 = vld.sshfl [vmem:[#allocation1 + $0x10] sm:$0xff pattern:$0x75316420]
  %v544 = vrot.slane %v541, 1
  %v545 = vrot.slane %v542, 1
  %v546 = vrot.slane %v543, 1
  %547 = vrot.lane.b32.xlu0 %v544, 110
  %v548 = vpop.permute.xlu0 %547
  %549 = vrot.lane.b32.xlu0 %v545, 110
  %v550 = vpop.permute.xlu0 %549
  %551 = vrot.lane.b32.xlu0 %v546, 110
  %v552 = vpop.permute.xlu0 %551
  %v553 = vsel %vm185, %v548, %v550
  %v554 = vsel %vm185, %v550, %v552
  %557 = vst [vmem:[#allocation2 + $0x10] sm:$0x80] %v553
  %558 = vst [vmem:[#allocation2 + $0x18] sm:$0x80] %v554
  %559 = vst [vmem:[#allocation2 + $0x20] sm:$0x3] %v553
  %560 = vst [vmem:[#allocation2 + $0x28] sm:$0x3] %v554
  %561 = vst [vmem:[#allocation1] ss:$2 sm:$0xff] %v443
  %s562 = scalar_lea.vmem [#allocation1], 16
  %563 = vst [vmem:[%s562] ss:$2 sm:$0xff] %v444
  %v564 = vld.sshfl [vmem:[#allocation1] sm:$0xff pattern:$0x75316420]
  %v565 = vld.sshfl [vmem:[#allocation1 + $0x8] sm:$0xff pattern:$0x75316420]
  %v566 = vld.sshfl [vmem:[#allocation1 + $0x10] sm:$0xff pattern:$0x75316420]
  %v567 = vrot.slane %v564, 6
  %v568 = vrot.slane %v565, 6
  %v569 = vrot.slane %v566, 6
  %570 = vrot.lane.b32.xlu0 %v567, 96
  %v571 = vpop.permute.xlu0 %570
  %572 = vrot.lane.b32.xlu0 %v568, 96
  %v573 = vpop.permute.xlu0 %572
  %574 = vrot.lane.b32.xlu0 %v569, 96
  %v575 = vpop.permute.xlu0 %574
  %v576 = vsel %vm209, %v571, %v573
  %v577 = vsel %vm209, %v573, %v575
  %580 = vst [vmem:[#allocation2 + $0x20] sm:$0x1c] %v576
  %581 = vst [vmem:[#allocation2 + $0x28] sm:$0x1c] %v577
  %582 = vst [vmem:[#allocation1] ss:$2 sm:$0xff] %v443
  %s583 = scalar_lea.vmem [#allocation1], 16
  %584 = vst [vmem:[%s583] ss:$2 sm:$0xff] %v444
  %v585 = vld.sshfl [vmem:[#allocation1] sm:$0xff pattern:$0x75316420]
  %v586 = vld.sshfl [vmem:[#allocation1 + $0x8] sm:$0xff pattern:$0x75316420]
  %v587 = vld.sshfl [vmem:[#allocation1 + $0x10] sm:$0xff pattern:$0x75316420]
  %v588 = vrot.slane %v585, 3
  %v589 = vrot.slane %v586, 3
  %v590 = vrot.slane %v587, 3
  %591 = vrot.lane.b32.xlu0 %v588, 95
  %v592 = vpop.permute.xlu0 %591
  %593 = vrot.lane.b32.xlu0 %v589, 95
  %v594 = vpop.permute.xlu0 %593
  %595 = vrot.lane.b32.xlu0 %v590, 95
  %v596 = vpop.permute.xlu0 %595
  %v597 = vsel %vm231, %v592, %v594
  %v598 = vsel %vm231, %v594, %v596
  %601 = vst [vmem:[#allocation2 + $0x20] sm:$0xe0] %v597
  %602 = vst [vmem:[#allocation2 + $0x28] sm:$0xe0] %v598
  %603 = vst [vmem:[#allocation1] ss:$2 sm:$0xff] %v443
  %s604 = scalar_lea.vmem [#allocation1], 16
  %605 = vst [vmem:[%s604] ss:$2 sm:$0xff] %v444
  %v606 = vld.sshfl [vmem:[#allocation1] sm:$0xff pattern:$0x75316420]
  %v607 = vld.sshfl [vmem:[#allocation1 + $0x8] sm:$0xff pattern:$0x75316420]
  %v608 = vld.sshfl [vmem:[#allocation1 + $0x10] sm:$0xff pattern:$0x75316420]
  %609 = vrot.lane.b32.xlu0 %v606, 94
  %v610 = vpop.permute.xlu0 %609
  %611 = vrot.lane.b32.xlu0 %v607, 94
  %v612 = vpop.permute.xlu0 %611
  %613 = vrot.lane.b32.xlu0 %v608, 94
  %v614 = vpop.permute.xlu0 %613
  %v615 = vsel %vm250, %v610, %v612
  %v616 = vsel %vm250, %v612, %v614
  %619 = vst [vmem:[#allocation2 + $0x30] sm:$0x7] %v615
  %620 = vst [vmem:[#allocation2 + $0x38] sm:$0x7] %v616
  %v621 = vld [vmem:[#allocation2] sm:$0xff]
  %v622 = vld [vmem:[#allocation2 + $0x8] sm:$0xff]
  %v623 = vld [vmem:[#allocation2 + $0x10] sm:$0xff]
  %v624 = vld [vmem:[#allocation2 + $0x18] sm:$0xff]
  %v625 = vld [vmem:[#allocation2 + $0x20] sm:$0xff]
  %v626 = vld [vmem:[#allocation2 + $0x28] sm:$0xff]
  %v627 = vld [vmem:[#allocation2 + $0x30] sm:$0xff]
  %v628 = vld [vmem:[#allocation2 + $0x38] sm:$0xff]
  %629 = vmatpush.msra.mxu0 0.0
  %630 = vmatpush.msra.mxu0 0.0
  %631 = vmatpush.msra.mxu0 0.0
  %632 = vmatpush.msra.mxu0 0.0
  %633 = vmatpush.msra.mxu0 0.0
  %634 = vmatpush.msra.mxu0 0.0
  %635 = vmatpush.msra.mxu0 0.0
  %636 = vmatpush.msra.mxu0 0.0
  %637 = vmatpush.msra.mxu0 0.0
  %638 = vmatpush.msra.mxu0 0.0
  %639 = vmatpush.msra.mxu0 0.0
  %640 = vmatpush.msra.mxu0 0.0
  %641 = vmatpush.msra.mxu0 %v627
  %642 = vmatpush.msra.mxu0 %v625
  %643 = vmatpush.msra.mxu0 %v623
  %644 = vmatpush.msra.mxu0 %v621
  %645 = vmatmul.f32.gmra.mxu0 %v267
  %v646 = vpop.f32.mrf.mxu0
  %v647 = vadd.f32 0.0, %v646
  %648 = vmatmul.f32.gmra.mxu0 %v270
  %v649 = vpop.f32.mrf.mxu0
  %v650 = vadd.f32 0.0, %v649
  %651 = vdwg.mxu0
  %652 = vmatpush.msra.mxu0 0.0
  %653 = vmatpush.msra.mxu0 0.0
  %654 = vmatpush.msra.mxu0 0.0
  %655 = vmatpush.msra.mxu0 0.0
  %656 = vmatpush.msra.mxu0 0.0
  %657 = vmatpush.msra.mxu0 0.0
  %658 = vmatpush.msra.mxu0 0.0
  %659 = vmatpush.msra.mxu0 0.0
  %660 = vmatpush.msra.mxu0 0.0
  %661 = vmatpush.msra.mxu0 0.0
  %662 = vmatpush.msra.mxu0 0.0
  %663 = vmatpush.msra.mxu0 0.0
  %664 = vmatpush.msra.mxu0 %v628
  %665 = vmatpush.msra.mxu0 %v626
  %666 = vmatpush.msra.mxu0 %v624
  %667 = vmatpush.msra.mxu0 %v622
  %668 = vmatmul.f32.gmra.mxu0 %v267
  %v669 = vpop.f32.mrf.mxu0
  %v670 = vadd.f32 0.0, %v669
  %671 = vmatmul.f32.gmra.mxu0 %v270
  %v672 = vpop.f32.mrf.mxu0
  %v673 = vadd.f32 0.0, %v672
  %674 = vdwg.mxu0
  %v675 = vmin.f32 %v647, 20.0
  %v676 = vmin.f32 %v670, 20.0
  %v677 = vmin.f32 %v650, 20.0
  %v678 = vmin.f32 %v673, 20.0
  %v679 = vmul.f32 %v675, 1.442695
  %v680 = vpow.pop %v679
  %v681 = vmul.f32 %v676, 1.442695
  %v682 = vpow.pop %v681
  %v683 = vmul.f32 %v677, 1.442695
  %v684 = vpow.pop %v683
  %v685 = vmul.f32 %v678, 1.442695
  %v686 = vpow.pop %v685
  %v687 = vadd.f32 %v680, 2.0
  %v688 = vadd.f32 %v682, 2.0
  %v689 = vadd.f32 %v684, 2.0
  %v690 = vadd.f32 %v686, 2.0
  %v691 = vmul.f32 %v680, %v687
  %v692 = vmul.f32 %v682, %v688
  %v693 = vmul.f32 %v684, %v689
  %v694 = vmul.f32 %v686, %v690
  %vm695 = vcmp.gt.f32.partialorder %v647, 20.0
  %vm696 = vcmp.gt.f32.partialorder %v670, 20.0
  %vm697 = vcmp.gt.f32.partialorder %v650, 20.0
  %vm698 = vcmp.gt.f32.partialorder %v673, 20.0
  %v699 = vadd.f32 %v691, 2.0
  %v700 = vadd.f32 %v692, 2.0
  %v701 = vadd.f32 %v693, 2.0
  %v702 = vadd.f32 %v694, 2.0
  %v703 = vrcp.pop %v699
  %v704 = vmul.f32 %v699, %v703
  %v705 = vsub.f32 1.0, %v704
  %v706 = vmul.f32 %v703, %v705
  %v707 = vadd.f32 %v703, %v706
  %vm708 = vweird.f32 %v699
  %vm709 = vweird.f32 %v703
  %vm710 = vmor %vm708, %vm709
  %v711 = vsel %vm710, %v703, %v707
  %v712 = vand.u32 2147483647, %v699
  %vm713 = vcmp.eq.f32.partialorder %v712, 8.507059e+37
  %v714 = vand.u32 %v699, 2147483648
  %v715 = vor.u32 1.1754944e-38, %v714
  %v716 = vsel %vm713, %v715, %v711
  %v717 = vmul.f32 %v691, %v716
  %v718 = vrcp.pop %v700
  %v719 = vmul.f32 %v700, %v718
  %v720 = vsub.f32 1.0, %v719
  %v721 = vmul.f32 %v718, %v720
  %v722 = vadd.f32 %v718, %v721
  %vm723 = vweird.f32 %v700
  %vm724 = vweird.f32 %v718
  %vm725 = vmor %vm723, %vm724
  %v726 = vsel %vm725, %v718, %v722
  %v727 = vand.u32 2147483647, %v700
  %vm728 = vcmp.eq.f32.partialorder %v727, 8.507059e+37
  %v729 = vand.u32 %v700, 2147483648
  %v730 = vor.u32 1.1754944e-38, %v729
  %v731 = vsel %vm728, %v730, %v726
  %v732 = vmul.f32 %v692, %v731
  %v733 = vrcp.pop %v701
  %v734 = vmul.f32 %v701, %v733
  %v735 = vsub.f32 1.0, %v734
  %v736 = vmul.f32 %v733, %v735
  %v737 = vadd.f32 %v733, %v736
  %vm738 = vweird.f32 %v701
  %vm739 = vweird.f32 %v733
  %vm740 = vmor %vm738, %vm739
  %v741 = vsel %vm740, %v733, %v737
  %v742 = vand.u32 2147483647, %v701
  %vm743 = vcmp.eq.f32.partialorder %v742, 8.507059e+37
  %v744 = vand.u32 %v701, 2147483648
  %v745 = vor.u32 1.1754944e-38, %v744
  %v746 = vsel %vm743, %v745, %v741
  %v747 = vmul.f32 %v693, %v746
  %v748 = vrcp.pop %v702
  %v749 = vmul.f32 %v702, %v748
  %v750 = vsub.f32 1.0, %v749
  %v751 = vmul.f32 %v748, %v750
  %v752 = vadd.f32 %v748, %v751
  %vm753 = vweird.f32 %v702
  %vm754 = vweird.f32 %v748
  %vm755 = vmor %vm753, %vm754
  %v756 = vsel %vm755, %v748, %v752
  %v757 = vand.u32 2147483647, %v702
  %vm758 = vcmp.eq.f32.partialorder %v757, 8.507059e+37
  %v759 = vand.u32 %v702, 2147483648
  %v760 = vor.u32 1.1754944e-38, %v759
  %v761 = vsel %vm758, %v760, %v756
  %v762 = vmul.f32 %v694, %v761
  %v763 = vmul.f32 %v647, %v717
  %v764 = vmul.f32 %v670, %v732
  %v765 = vmul.f32 %v650, %v747
  %v766 = vmul.f32 %v673, %v762
  %v767 = vsel %vm695, %v647, %v763
  %v768 = vsel %vm696, %v670, %v764
  %v769 = vsel %vm697, %v650, %v765
  %v770 = vsel %vm698, %v673, %v766
  %s771 = scalar_lea.vmem %s4, 32
  %772 = vst [vmem:[%s771] sm:$0xff] %v767
  %773 = vst [vmem:[%s771 + $0x8] sm:$0xff] %v768
  %774 = vst [vmem:[%s771 + $0x10] sm:$0xff] %v769
  %775 = vst [vmem:[%s771 + $0x18] sm:$0xff] %v770
  %v776 = vmul.f32 %v767, %v52
  %v777 = vmul.f32 %v768, %v53
  %v778 = vmul.f32 %v769, %v52
  %v779 = vmul.f32 %v770, %v53
  %v780 = vadd.f32 %v776, %v777
  %781 = vadd.xlane.f32.xlu0 %v780
  %v782 = vpop.xlane.xlu0 %781
  %v783 = vadd.f32 %v778, %v779
  %784 = vadd.xlane.f32.xlu0 %v783
  %v785 = vpop.xlane.xlu0 %784
  %v786 = vadd.f32 %v428, %v782
  %v787 = vadd.f32 %v429, %v785
  %v788 = vmul.f32 %v776, %v767
  %v789 = vmul.f32 %v777, %v768
  %v790 = vmul.f32 %v778, %v769
  %v791 = vmul.f32 %v779, %v770
  %v792 = vadd.f32 %v788, %v789
  %793 = vadd.xlane.f32.xlu0 %v792
  %v794 = vpop.xlane.xlu0 %793
  %v795 = vadd.f32 %v790, %v791
  %796 = vadd.xlane.f32.xlu0 %v795
  %v797 = vpop.xlane.xlu0 %796
  %v798 = vadd.f32 %v440, %v794
  %v799 = vadd.f32 %v441, %v797
  %v800 = vrcp.pop 392.0
  %v801 = vmul.f32 392.0, %v800
  %v802 = vsub.f32 1.0, %v801
  %v803 = vmul.f32 %v800, %v802
  %v804 = vadd.f32 %v800, %v803
  %vm805 = vweird.f32 %v800
  %v806 = vsel %vm805, %v800, %v804
  %v807 = vmul.f32 %v786, %v806
  %v808 = vmul.f32 %v787, %v806
  %v809 = vmul.f32 %v798, %v806
  %v810 = vmul.f32 %v799, %v806
  %v811 = vmul.f32 %v807, %v807
  %v812 = vmul.f32 %v808, %v808
  %v813 = vsub.f32 %v809, %v811
  %v814 = vsub.f32 %v810, %v812
  %v815 = vld [vmem:[%s2] sm:$0xff]
  %v816 = vld [vmem:[%s2 + $0x8] sm:$0xff]
  %v817 = vadd.f32 %v813, 1e-05
  %v818 = vadd.f32 %v814, 1e-05
  %v819 = vrsqrt.pop %v817
  %v820 = vmul.f32 %v819, %v817
  %v821 = vmul.f32 %v820, %v819
  %v822 = vmul.f32 0.5, %v821
  %v823 = vsub.f32 1.5, %v822
  %v824 = vmul.f32 %v819, %v823
  %vm825 = vweird.f32 %v817
  %vm826 = vweird.f32 %v819
  %vm827 = vmor %vm825, %vm826
  %v828 = vsel %vm827, %v819, %v824
  %v829 = vrsqrt.pop %v818
  %v830 = vmul.f32 %v829, %v818
  %v831 = vmul.f32 %v830, %v829
  %v832 = vmul.f32 0.5, %v831
  %v833 = vsub.f32 1.5, %v832
  %v834 = vmul.f32 %v829, %v833
  %vm835 = vweird.f32 %v818
  %vm836 = vweird.f32 %v829
  %vm837 = vmor %vm835, %vm836
  %v838 = vsel %vm837, %v829, %v834
  %v839 = vmul.f32 %v815, %v828
  %v840 = vmul.f32 %v816, %v838
  %v841 = vld [vmem:[%s3] sm:$0xff]
  %v842 = vld [vmem:[%s3 + $0x8] sm:$0xff]
  %v843 = vmul.f32 %v807, %v839
  %v844 = vmul.f32 %v808, %v840
  %v845 = vsub.f32 %v841, %v843
  %v846 = vsub.f32 %v842, %v844
  %v847 = vld [vmem:[%s4] sm:$0xff]
  %v848 = vld [vmem:[%s4 + $0x8] sm:$0xff]
  %v849 = vld [vmem:[%s4 + $0x10] sm:$0xff]
  %v850 = vld [vmem:[%s4 + $0x18] sm:$0xff]
  %852 = vset.pattern.permute.xlu0 0
  %853 = vperm.xlu0 %852, %v839
  %v854 = vpop.permute.xlu0 %853
  %857 = vset.pattern.permute.xlu0 0
  %858 = vperm.xlu0 %857, %v840
  %v859 = vpop.permute.xlu0 %858
  %v861 = vmul.f32 %v847, %v854
  %v862 = vmul.f32 %v848, %v854
  %v863 = vmul.f32 %v849, %v859
  %v864 = vmul.f32 %v850, %v859
  %866 = vset.pattern.permute.xlu0 0
  %867 = vperm.xlu0 %866, %v845
  %v868 = vpop.permute.xlu0 %867
  %871 = vset.pattern.permute.xlu0 0
  %872 = vperm.xlu0 %871, %v846
  %v873 = vpop.permute.xlu0 %872
  %v875 = vadd.f32 %v861, %v868
  %v876 = vadd.f32 %v862, %v868
  %v877 = vadd.f32 %v863, %v873
  %v878 = vadd.f32 %v864, %v873
  %879 = vst [vmem:[%s4] sm:$0xff] %v875
  %880 = vst [vmem:[%s4 + $0x8] sm:$0xff] %v876
  %881 = vst [vmem:[%s4 + $0x10] sm:$0xff] %v877
  %882 = vst [vmem:[%s4 + $0x18] sm:$0xff] %v878
  %v883 = vld [vmem:[%s771] sm:$0xff]
  %v884 = vld [vmem:[%s771 + $0x8] sm:$0xff]
  %v885 = vld [vmem:[%s771 + $0x10] sm:$0xff]
  %v886 = vld [vmem:[%s771 + $0x18] sm:$0xff]
  %v887 = vmul.f32 %v883, %v854
  %v888 = vmul.f32 %v884, %v854
  %v889 = vmul.f32 %v885, %v859
  %v890 = vmul.f32 %v886, %v859
  %v891 = vadd.f32 %v887, %v868
  %v892 = vadd.f32 %v888, %v868
  %v893 = vadd.f32 %v889, %v873
  %v894 = vadd.f32 %v890, %v873
  %895 = vst [vmem:[%s771] sm:$0xff] %v891
  %896 = vst [vmem:[%s771 + $0x8] sm:$0xff] %v892
  %897 = vst [vmem:[%s771 + $0x10] sm:$0xff] %v893
  %898 = vst [vmem:[%s771 + $0x18] sm:$0xff] %v894
  // Predicated region
  $region18: #{model_new_forward.1} parent=0 // pred_check
    _
  $region19: #{model_new_forward.1} parent=0 // pred_check_branch
    %900 = sbr.rel (0) target = $region21
  $region20: #{model_new_forward.1} parent=0 // pred_region
    _
  $region21: #{model_new_forward.1} parent=0 // pred_fallthru
    _
  // Predicated region
  $region22: #{model_new_forward.1} parent=0 // pred_check
    _
  $region23: #{model_new_forward.1} parent=0 // pred_check_branch
    %902 = sbr.rel (0) target = $region25
  $region24: #{model_new_forward.1} parent=0 // pred_region
    _
  $region25: #{model_new_forward.1} parent=0 // pred_fallthru
    _

</llo_original>
